<compile_context>
chip_gen: v7x
topology: tpu7x:2x2x1
jax: 0.10.0
libtpu: 0.0.40
codegen_flags: <defaults>
</compile_context>

<pallas_src>
from collections import OrderedDict
from functools import partial

import jax
import jax.numpy as jnp
from jax.experimental import pallas as pl
from jax.experimental.pallas import tpu as pltpu


def _round_up(x, m):
    return ((x + m - 1) // m) * m


def _collab_gating_kernel(f_ref, wg1_ref, wg2_ref, bg_ref, wh_ref, bh_ref,
                          w_out_ref, g_out_ref, *, compute_dtype):
    # f_ref:          (M, TN, D) feature tile (input dtype)
    # wg1_ref/wg2_ref:(D, D)     g-Linear weight split over the concat
    # bg_ref:         (1, D), wh_ref: (D, D), bh_ref: (1, D)
    # w_out_ref:      (M, TN, D) sigmoid gate weights (feature dtype)
    # g_out_ref:      (M, TN, D) gated features       (feature dtype)
    M, TN, D = f_ref.shape

    f = f_ref[...]
    f_flat = f.reshape(M * TN, D)

    # g-Linear folded over the concat: cat(f1, f2) @ Wg == f1 @ Wg1 + f2 @ Wg2.
    # Two separate dots keep both halves lane-aligned when D < 128; MXU fill is
    # negligible at these sizes either way (kernel is HBM/VPU-bound).
    p1 = jnp.dot(f_flat, wg1_ref[...], preferred_element_type=jnp.float32)
    p2 = jnp.dot(f_flat, wg2_ref[...], preferred_element_type=jnp.float32)
    p1 = (p1 + bg_ref[...]).reshape(M, TN, D).astype(compute_dtype)  # bias once
    p2 = p2.reshape(M, TN, D).astype(compute_dtype)

    # acc[k] = sum_{j != k} relu(p1[k] + p2[j]) + relu(p1[j] + p2[k]).
    # Each relu is computed exactly once; the pair sum t is shared by acc[k] and
    # acc[j]; the diagonal (k, k) is never formed.  M is small -> unrolled.
    accs = [None] * M
    for k in range(M):
        for j in range(k + 1, M):
            t = (jnp.maximum(p1[k] + p2[j], 0) +
                 jnp.maximum(p1[j] + p2[k], 0))
            accs[k] = t if accs[k] is None else accs[k] + t
            accs[j] = t if accs[j] is None else accs[j] + t
    acc = jnp.concatenate(accs, axis=0)                      # (M*TN, D)

    # h-Linear batched over all modalities, then sigmoid gate.
    logits = jnp.dot(acc, wh_ref[...], preferred_element_type=jnp.float32)
    logits = logits + bh_ref[...]
    w = jax.nn.sigmoid(logits)                               # (M*TN, D) f32
    gated = f_flat.astype(jnp.float32) * w

    w_out_ref[...] = w.reshape(M, TN, D).astype(w_out_ref.dtype)
    g_out_ref[...] = gated.reshape(M, TN, D).astype(g_out_ref.dtype)


def collaborative_gating(features, wg, bg, wh, bh, *, max_tile_rows=4096,
                         elementwise_dtype=None):
    """features: OrderedDict[name -> (..., D)].  Returns (features, weights, gated)."""
    keys = list(features.keys())
    M = len(keys)
    assert M >= 2, "CollaborativeGating needs at least two feature streams"
    shapes = [features[k].shape for k in keys]
    max_shape = tuple(max(s) for s in zip(*shapes))
    # Per-pair .expand() in the original only grows size-1 dims; pre-broadcasting
    # to the common max shape is equivalent only under that condition.
    for s in shapes:
        assert all(d == m or d == 1 for d, m in zip(s, max_shape)), \
            "expand() only broadcasts size-1 dims"

    # TODO(synk): size-1 modalities are materialized to the full shape here,
    # which multiplies their HBM traffic by the broadcast factor; an in-kernel
    # stride-0 broadcast (per-modality BlockSpec) would avoid it.
    parts = [features[k] if features[k].shape == max_shape
             else jnp.broadcast_to(features[k], max_shape) for k in keys]
    stacked = jnp.stack(parts)

    *lead, D = max_shape
    assert wg.shape == (2 * D, D) and wh.shape == (D, D)
    N = 1
    for d in lead:
        N *= d
    f = stacked.reshape(M, N, D)

    in_dt = f.dtype
    out_dt = in_dt                                  # preserve the feature dtype
    if elementwise_dtype is None:
        # bf16 pair math when features are bf16 (native bf16 VPU on v6e/v7x).
        # TODO(synk): pass elementwise_dtype=jnp.float32 on v5e (no bf16 VALU).
        elementwise_dtype = jnp.bfloat16 if in_dt == jnp.bfloat16 else jnp.float32

    in_sz = jnp.dtype(in_dt).itemsize
    out_sz = jnp.dtype(out_dt).itemsize
    sub = max(8, 32 // in_sz)                       # dtype-specific sublane multiple
    max_tile_rows = max(sub, (max_tile_rows // sub) * sub)

    # Conservative per-row VMEM estimate (includes 128-lane padding when D < 128):
    # 2x double-buffered input tile, 2 double-buffered outputs, and ~(3M + 2)
    # live f32 intermediates (p1, p2, per-key accumulators, pair temps, logits,
    # weights, gated).
    padded_D = _round_up(D, 128)
    per_row = padded_D * (2 * M * in_sz + 4 * M * out_sz + (3 * M + 2) * 4)
    vmem_budget = 28 * 1024 * 1024
    tn_cap = max(sub, (vmem_budget // per_row) // sub * sub)

    TN = max(sub, min(max_tile_rows, tn_cap, _round_up(N, sub)))
    # Keep >= 2 grid steps whenever the rows allow it: dimension_semantics
    # ("parallel",) then shards the axis across both TensorCores on v7x.
    if _round_up(N, sub) <= TN and N > sub:
        TN = _round_up(pl.cdiv(N, 2), sub)
    N_pad = _round_up(N, TN)
    if N_pad != N:
        f = jnp.pad(f, ((0, 0), (0, N_pad - N), (0, 0)))

    # g-Linear weight split over the concat along dim=-1.
    wg1 = wg[:D, :]
    wg2 = wg[D:, :]
    bg2 = bg.reshape(1, D)
    bh2 = bh.reshape(1, D)

    est_vmem = per_row * TN
    vmem_limit = int(min(48 * 1024 * 1024,
                         max(est_vmem + 16 * 1024 * 1024, 32 * 1024 * 1024)))

    tile_map = lambda t: (0, t, 0)
    full_map = lambda t: (0, 0)
    grid_spec = pltpu.PrefetchScalarGridSpec(
        num_scalar_prefetch=0,
        grid=(N_pad // TN,),
        in_specs=[
            pl.BlockSpec((M, TN, D), tile_map),     # feature tile
            pl.BlockSpec((D, D), full_map),         # Wg1
            pl.BlockSpec((D, D), full_map),         # Wg2
            pl.BlockSpec((1, D), full_map),         # bg
            pl.BlockSpec((D, D), full_map),         # Wh
            pl.BlockSpec((1, D), full_map),         # bh
        ],
        out_specs=[
            pl.BlockSpec((M, TN, D), tile_map),     # sigmoid weights
            pl.BlockSpec((M, TN, D), tile_map),     # gated features
        ],
    )
    w_out, g_out = pl.pallas_call(
        partial(_collab_gating_kernel, compute_dtype=elementwise_dtype),
        out_shape=(jax.ShapeDtypeStruct((M, N_pad, D), out_dt),
                   jax.ShapeDtypeStruct((M, N_pad, D), out_dt)),
        grid_spec=grid_spec,
        compiler_params=pltpu.CompilerParams(
            dimension_semantics=("parallel",),
            vmem_limit_bytes=vmem_limit),
    )(f, wg1, wg2, bg2, wh, bh2)

    w_all = w_out[:, :N, :].reshape((M,) + max_shape)
    g_all = g_out[:, :N, :].reshape((M,) + max_shape)

    weights = OrderedDict((k, w_all[i]) for i, k in enumerate(keys))
    gated = OrderedDict((k, g_all[i]) for i, k in enumerate(keys))
    # Original forward returns the input features unchanged (product discarded).
    return features, weights, gated


def _reference(features, wg, bg, wh, bh):
    """Pure-JAX transcription of the PyTorch forward (g/h = single Linear)."""
    keys = list(features.keys())
    res = {}
    for k1 in keys:
        for k2 in keys:
            if k1 == k2:
                continue
            x = jnp.concatenate([features[k1], features[k2]], axis=-1)
            res[(k1, k2)] = jax.nn.relu(x @ wg + bg)
    weights, gated = {}, {}
    for k in keys:
        s = sum(v for pair, v in res.items() if k in pair)
        weights[k] = jax.nn.sigmoid(s @ wh + bh)
        gated[k] = features[k] * weights[k]
    return weights, gated


if __name__ == "__main__":
    B, T, D = 2, 8, 32          # small shapes; dim = 32
    names = ["audio", "rgb", "text"]

    root = jax.random.PRNGKey(0)
    kwg, kbg, kwh, kbh, *fks = jax.random.split(root, 4 + len(names))
    wg = jax.random.normal(kwg, (2 * D, D), jnp.float32) * 0.05   # g: Linear(2D -> D)
    bg = jax.random.normal(kbg, (D,), jnp.float32) * 0.05
    wh = jax.random.normal(kwh, (D, D), jnp.float32) * 0.05       # h: Linear(D -> D)
    bh = jax.random.normal(kbh, (D,), jnp.float32) * 0.05

    features = OrderedDict(
        (name, jax.random.normal(fk, (B, T, D), jnp.float32))
        for name, fk in zip(names, fks)
    )

    feats_out, weights, gated = collaborative_gating(features, wg, bg, wh, bh)
    jax.block_until_ready(gated[names[-1]])

    # Correctness check against the pure-JAX reference.
    ref_w, ref_g = _reference(features, wg, bg, wh, bh)
    for name in names:
        assert jnp.allclose(weights[name], ref_w[name], atol=1e-5, rtol=1e-5)
        assert jnp.allclose(gated[name], ref_g[name], atol=1e-5, rtol=1e-5)
        # original forward returns features unchanged
        assert feats_out[name] is features[name]

    print("KERNEL_OK")
</pallas_src>

<mosaic_0001>
module attributes {stable_mosaic.version = 11 : i64} {
  func.func @_collab_gating_kernel(%arg0: i32, %arg1: memref<3x8x32xf32, #tpu.memory_space<vmem>>, %arg2: memref<32x32xf32, #tpu.memory_space<vmem>>, %arg3: memref<32x32xf32, #tpu.memory_space<vmem>>, %arg4: memref<1x32xf32, #tpu.memory_space<vmem>>, %arg5: memref<32x32xf32, #tpu.memory_space<vmem>>, %arg6: memref<1x32xf32, #tpu.memory_space<vmem>>, %arg7: memref<3x8x32xf32, #tpu.memory_space<vmem>>, %arg8: memref<3x8x32xf32, #tpu.memory_space<vmem>>) attributes {dimension_semantics = [#tpu.dimension_semantics<parallel>], iteration_bounds = array<i64: 2>, scalar_prefetch = 0 : i64, scratch_operands = 0 : i64, tpu.core_type = #tpu.core_type<tc>, window_params = [{transform_indices = @transform_0, window_bounds = array<i64: 3, 8, 32>}, {pipeline_mode = #tpu.pipeline_mode<synchronous>, transform_indices = @transform_1, window_bounds = array<i64: 32, 32>}, {pipeline_mode = #tpu.pipeline_mode<synchronous>, transform_indices = @transform_2, window_bounds = array<i64: 32, 32>}, {pipeline_mode = #tpu.pipeline_mode<synchronous>, transform_indices = @transform_3, window_bounds = array<i64: 1, 32>}, {pipeline_mode = #tpu.pipeline_mode<synchronous>, transform_indices = @transform_4, window_bounds = array<i64: 32, 32>}, {pipeline_mode = #tpu.pipeline_mode<synchronous>, transform_indices = @transform_5, window_bounds = array<i64: 1, 32>}, {transform_indices = @transform_6, window_bounds = array<i64: 3, 8, 32>}, {transform_indices = @transform_7, window_bounds = array<i64: 3, 8, 32>}]} {
    %c0 = arith.constant 0 : index
    %c0_0 = arith.constant 0 : index
    %c0_1 = arith.constant 0 : index
    %0 = vector.load %arg1[%c0, %c0_0, %c0_1] : memref<3x8x32xf32, #tpu.memory_space<vmem>>, vector<3x8x32xf32>
    %1 = vector.shape_cast %0 : vector<3x8x32xf32> to vector<24x32xf32>
    %c0_2 = arith.constant 0 : index
    %c0_3 = arith.constant 0 : index
    %2 = vector.load %arg2[%c0_2, %c0_3] : memref<32x32xf32, #tpu.memory_space<vmem>>, vector<32x32xf32>
    %cst = arith.constant dense<0.000000e+00> : vector<24x32xf32>
    %3 = tpu.matmul %1, %2, %cst {dimension_numbers = #tpu.dot_dimension_numbers<[1], [0], [0], [1], [0, 0, 1, 1], [], []>} : vector<24x32xf32>, vector<32x32xf32>, vector<24x32xf32> -> vector<24x32xf32>
    %c0_4 = arith.constant 0 : index
    %c0_5 = arith.constant 0 : index
    %4 = vector.load %arg3[%c0_4, %c0_5] : memref<32x32xf32, #tpu.memory_space<vmem>>, vector<32x32xf32>
    %cst_6 = arith.constant dense<0.000000e+00> : vector<24x32xf32>
    %5 = tpu.matmul %1, %4, %cst_6 {dimension_numbers = #tpu.dot_dimension_numbers<[1], [0], [0], [1], [0, 0, 1, 1], [], []>} : vector<24x32xf32>, vector<32x32xf32>, vector<24x32xf32> -> vector<24x32xf32>
    %c0_7 = arith.constant 0 : index
    %c0_8 = arith.constant 0 : index
    %6 = vector.load %arg4[%c0_7, %c0_8] : memref<1x32xf32, #tpu.memory_space<vmem>>, vector<1x32xf32>
    %7 = vector.broadcast %6 : vector<1x32xf32> to vector<24x32xf32>
    %8 = arith.addf %3, %7 : vector<24x32xf32>
    %9 = vector.shape_cast %8 : vector<24x32xf32> to vector<3x8x32xf32>
    %10 = vector.shape_cast %5 : vector<24x32xf32> to vector<3x8x32xf32>
    %11 = vector.extract_strided_slice %9 {offsets = [0, 0, 0], sizes = [1, 8, 32], strides = [1, 1, 1]} : vector<3x8x32xf32> to vector<1x8x32xf32>
    %12 = vector.shape_cast %11 : vector<1x8x32xf32> to vector<8x32xf32>
    %13 = vector.extract_strided_slice %10 {offsets = [1, 0, 0], sizes = [1, 8, 32], strides = [1, 1, 1]} : vector<3x8x32xf32> to vector<1x8x32xf32>
    %14 = vector.shape_cast %13 : vector<1x8x32xf32> to vector<8x32xf32>
    %15 = arith.addf %12, %14 : vector<8x32xf32>
    %cst_9 = arith.constant 0.000000e+00 : f32
    %16 = vector.broadcast %cst_9 : f32 to vector<8x32xf32>
    %17 = arith.maximumf %15, %16 : vector<8x32xf32>
    %18 = vector.extract_strided_slice %9 {offsets = [1, 0, 0], sizes = [1, 8, 32], strides = [1, 1, 1]} : vector<3x8x32xf32> to vector<1x8x32xf32>
    %19 = vector.shape_cast %18 : vector<1x8x32xf32> to vector<8x32xf32>
    %20 = vector.extract_strided_slice %10 {offsets = [0, 0, 0], sizes = [1, 8, 32], strides = [1, 1, 1]} : vector<3x8x32xf32> to vector<1x8x32xf32>
    %21 = vector.shape_cast %20 : vector<1x8x32xf32> to vector<8x32xf32>
    %22 = arith.addf %19, %21 : vector<8x32xf32>
    %cst_10 = arith.constant 0.000000e+00 : f32
    %23 = vector.broadcast %cst_10 : f32 to vector<8x32xf32>
    %24 = arith.maximumf %22, %23 : vector<8x32xf32>
    %25 = arith.addf %17, %24 : vector<8x32xf32>
    %26 = vector.extract_strided_slice %9 {offsets = [0, 0, 0], sizes = [1, 8, 32], strides = [1, 1, 1]} : vector<3x8x32xf32> to vector<1x8x32xf32>
    %27 = vector.shape_cast %26 : vector<1x8x32xf32> to vector<8x32xf32>
    %28 = vector.extract_strided_slice %10 {offsets = [2, 0, 0], sizes = [1, 8, 32], strides = [1, 1, 1]} : vector<3x8x32xf32> to vector<1x8x32xf32>
    %29 = vector.shape_cast %28 : vector<1x8x32xf32> to vector<8x32xf32>
    %30 = arith.addf %27, %29 : vector<8x32xf32>
    %cst_11 = arith.constant 0.000000e+00 : f32
    %31 = vector.broadcast %cst_11 : f32 to vector<8x32xf32>
    %32 = arith.maximumf %30, %31 : vector<8x32xf32>
    %33 = vector.extract_strided_slice %9 {offsets = [2, 0, 0], sizes = [1, 8, 32], strides = [1, 1, 1]} : vector<3x8x32xf32> to vector<1x8x32xf32>
    %34 = vector.shape_cast %33 : vector<1x8x32xf32> to vector<8x32xf32>
    %35 = vector.extract_strided_slice %10 {offsets = [0, 0, 0], sizes = [1, 8, 32], strides = [1, 1, 1]} : vector<3x8x32xf32> to vector<1x8x32xf32>
    %36 = vector.shape_cast %35 : vector<1x8x32xf32> to vector<8x32xf32>
    %37 = arith.addf %34, %36 : vector<8x32xf32>
    %cst_12 = arith.constant 0.000000e+00 : f32
    %38 = vector.broadcast %cst_12 : f32 to vector<8x32xf32>
    %39 = arith.maximumf %37, %38 : vector<8x32xf32>
    %40 = arith.addf %32, %39 : vector<8x32xf32>
    %41 = arith.addf %25, %40 : vector<8x32xf32>
    %42 = vector.extract_strided_slice %9 {offsets = [1, 0, 0], sizes = [1, 8, 32], strides = [1, 1, 1]} : vector<3x8x32xf32> to vector<1x8x32xf32>
    %43 = vector.shape_cast %42 : vector<1x8x32xf32> to vector<8x32xf32>
    %44 = vector.extract_strided_slice %10 {offsets = [2, 0, 0], sizes = [1, 8, 32], strides = [1, 1, 1]} : vector<3x8x32xf32> to vector<1x8x32xf32>
    %45 = vector.shape_cast %44 : vector<1x8x32xf32> to vector<8x32xf32>
    %46 = arith.addf %43, %45 : vector<8x32xf32>
    %cst_13 = arith.constant 0.000000e+00 : f32
    %47 = vector.broadcast %cst_13 : f32 to vector<8x32xf32>
    %48 = arith.maximumf %46, %47 : vector<8x32xf32>
    %49 = vector.extract_strided_slice %9 {offsets = [2, 0, 0], sizes = [1, 8, 32], strides = [1, 1, 1]} : vector<3x8x32xf32> to vector<1x8x32xf32>
    %50 = vector.shape_cast %49 : vector<1x8x32xf32> to vector<8x32xf32>
    %51 = vector.extract_strided_slice %10 {offsets = [1, 0, 0], sizes = [1, 8, 32], strides = [1, 1, 1]} : vector<3x8x32xf32> to vector<1x8x32xf32>
    %52 = vector.shape_cast %51 : vector<1x8x32xf32> to vector<8x32xf32>
    %53 = arith.addf %50, %52 : vector<8x32xf32>
    %cst_14 = arith.constant 0.000000e+00 : f32
    %54 = vector.broadcast %cst_14 : f32 to vector<8x32xf32>
    %55 = arith.maximumf %53, %54 : vector<8x32xf32>
    %56 = arith.addf %48, %55 : vector<8x32xf32>
    %57 = arith.addf %25, %56 : vector<8x32xf32>
    %58 = arith.addf %40, %56 : vector<8x32xf32>
    %59 = tpu.concatenate %41, %57, %58 in 0 : vector<8x32xf32>, vector<8x32xf32>, vector<8x32xf32> -> vector<24x32xf32>
    %c0_15 = arith.constant 0 : index
    %c0_16 = arith.constant 0 : index
    %60 = vector.load %arg5[%c0_15, %c0_16] : memref<32x32xf32, #tpu.memory_space<vmem>>, vector<32x32xf32>
    %cst_17 = arith.constant dense<0.000000e+00> : vector<24x32xf32>
    %61 = tpu.matmul %59, %60, %cst_17 {dimension_numbers = #tpu.dot_dimension_numbers<[1], [0], [0], [1], [0, 0, 1, 1], [], []>} : vector<24x32xf32>, vector<32x32xf32>, vector<24x32xf32> -> vector<24x32xf32>
    %c0_18 = arith.constant 0 : index
    %c0_19 = arith.constant 0 : index
    %62 = vector.load %arg6[%c0_18, %c0_19] : memref<1x32xf32, #tpu.memory_space<vmem>>, vector<1x32xf32>
    %63 = vector.broadcast %62 : vector<1x32xf32> to vector<24x32xf32>
    %64 = arith.addf %61, %63 : vector<24x32xf32>
    %65 = arith.negf %64 : vector<24x32xf32>
    %66 = math.exp %65 : vector<24x32xf32>
    %cst_20 = arith.constant 1.000000e+00 : f32
    %67 = vector.broadcast %cst_20 : f32 to vector<24x32xf32>
    %68 = arith.addf %67, %66 : vector<24x32xf32>
    %69 = arith.divf %67, %68 : vector<24x32xf32>
    %70 = arith.mulf %1, %69 : vector<24x32xf32>
    %71 = vector.shape_cast %69 : vector<24x32xf32> to vector<3x8x32xf32>
    %c0_21 = arith.constant 0 : index
    %c0_22 = arith.constant 0 : index
    %c0_23 = arith.constant 0 : index
    %72 = vector.load %arg7[%c0_21, %c0_22, %c0_23] : memref<3x8x32xf32, #tpu.memory_space<vmem>>, vector<3x8x32xf32>
    tpu.vector_store %arg7[%c0_21, %c0_22, %c0_23], %71 {strides = array<i32>} : memref<3x8x32xf32, #tpu.memory_space<vmem>>, vector<3x8x32xf32>,
    %73 = vector.shape_cast %70 : vector<24x32xf32> to vector<3x8x32xf32>
    %c0_24 = arith.constant 0 : index
    %c0_25 = arith.constant 0 : index
    %c0_26 = arith.constant 0 : index
    %74 = vector.load %arg8[%c0_24, %c0_25, %c0_26] : memref<3x8x32xf32, #tpu.memory_space<vmem>>, vector<3x8x32xf32>
    tpu.vector_store %arg8[%c0_24, %c0_25, %c0_26], %73 {strides = array<i32>} : memref<3x8x32xf32, #tpu.memory_space<vmem>>, vector<3x8x32xf32>,
    return
  }
  func.func @transform_0(%arg0: i32) -> (i32, i32, i32) {
    %c0_i32 = arith.constant 0 : i32
    %c0_i32_0 = arith.constant 0 : i32
    %c0_i32_1 = arith.constant 0 : i32
    return %c0_i32, %arg0, %c0_i32_0 : i32, i32, i32
  }
  func.func @transform_1(%arg0: i32) -> (i32, i32) {
    %c0_i32 = arith.constant 0 : i32
    %c0_i32_0 = arith.constant 0 : i32
    %c0_i32_1 = arith.constant 0 : i32
    return %c0_i32, %c0_i32_0 : i32, i32
  }
  func.func @transform_2(%arg0: i32) -> (i32, i32) {
    %c0_i32 = arith.constant 0 : i32
    %c0_i32_0 = arith.constant 0 : i32
    %c0_i32_1 = arith.constant 0 : i32
    return %c0_i32, %c0_i32_0 : i32, i32
  }
  func.func @transform_3(%arg0: i32) -> (i32, i32) {
    %c0_i32 = arith.constant 0 : i32
    %c0_i32_0 = arith.constant 0 : i32
    %c0_i32_1 = arith.constant 0 : i32
    return %c0_i32, %c0_i32_0 : i32, i32
  }
  func.func @transform_4(%arg0: i32) -> (i32, i32) {
    %c0_i32 = arith.constant 0 : i32
    %c0_i32_0 = arith.constant 0 : i32
    %c0_i32_1 = arith.constant 0 : i32
    return %c0_i32, %c0_i32_0 : i32, i32
  }
  func.func @transform_5(%arg0: i32) -> (i32, i32) {
    %c0_i32 = arith.constant 0 : i32
    %c0_i32_0 = arith.constant 0 : i32
    %c0_i32_1 = arith.constant 0 : i32
    return %c0_i32, %c0_i32_0 : i32, i32
  }
  func.func @transform_6(%arg0: i32) -> (i32, i32, i32) {
    %c0_i32 = arith.constant 0 : i32
    %c0_i32_0 = arith.constant 0 : i32
    %c0_i32_1 = arith.constant 0 : i32
    return %c0_i32, %arg0, %c0_i32_0 : i32, i32, i32
  }
  func.func @transform_7(%arg0: i32) -> (i32, i32, i32) {
    %c0_i32 = arith.constant 0 : i32
    %c0_i32_0 = arith.constant 0 : i32
    %c0_i32_1 = arith.constant 0 : i32
    return %c0_i32, %arg0, %c0_i32_0 : i32, i32, i32
  }
}

</mosaic_0001>

<llo_original>
// kernel: tpu_custom_call.1
$region0: #{tpu_custom_call.1}
  #allocation0 [shape = 'u32[]', space=smem, size = 0x4, offset = 0x4, fixed_abs, tag = 'smem constant byte address 0x4 - core index']
  #allocation1 [shape = 'u32[144,128]{1,0:T(1,128)}', space=vmem, size = 0x12000, scoped, tag = 'internal scratch']
  %s0 = inlined_call_operand.hbm [shape: f32[3,16,32], index: 0, kind: input, shape index: {}]
  %s1 = inlined_call_operand.hbm [shape: f32[32,32], index: 1, kind: input, shape index: {}]
  %s2 = inlined_call_operand.hbm [shape: f32[32,32], index: 2, kind: input, shape index: {}]
  %s3 = inlined_call_operand.vmem [shape: f32[1,32], index: 3, kind: input, shape index: {}]
  %s4 = inlined_call_operand.hbm [shape: f32[32,32], index: 4, kind: input, shape index: {}]
  %s5 = inlined_call_operand.vmem [shape: f32[1,32], index: 5, kind: input, shape index: {}]
  %s6 = inlined_call_operand.hbm [shape: f32[3,16,32], index: 6, kind: output, shape index: {0}]
  %s7 = inlined_call_operand.hbm [shape: f32[3,16,32], index: 7, kind: output, shape index: {1}]
  %8 = xla_tuple %s6, %s7
  %s9 = sld [smem:[#allocation0]]
  $region81: #{tpu_custom_call.1} parent=0
    _
  %s11 = ssub.s32 1, %s9
  %s12 = scalar_select 0, %s11, %s9
  $region1: #{tpu_custom_call.1} parent=0
    #allocation2 [shape = 'u8[24576]{0}', space=vmem, size = 0x6000, scoped, tag = 'input window, operand 0']
    #allocation3 [shape = 's32[2]{0}', space=sflag, size = 0x8, scoped, tag = 'scoped memory for tpu_custom_call.1']
    #allocation4 [shape = 's32[2]{0}', space=sflag, size = 0x8, scoped, tag = 'scoped memory for tpu_custom_call.1']
    #allocation5 [shape = 'u8[16384]{0}', space=vmem, size = 0x4000, scoped, tag = 'input window, operand 1, single buffered']
    #allocation6 [shape = 's32[1]{0}', space=sflag, size = 0x4, scoped, tag = 'scoped memory for tpu_custom_call.1']
    #allocation7 [shape = 'u8[16384]{0}', space=vmem, size = 0x4000, scoped, tag = 'input window, operand 2, single buffered']
    #allocation8 [shape = 'u8[16384]{0}', space=vmem, size = 0x4000, scoped, tag = 'input window, operand 4, single buffered']
    #allocation9 [shape = 's32[1]{0}', space=sflag, size = 0x4, scoped, tag = 'scoped memory for tpu_custom_call.1']
    #allocation10 [shape = 'u8[24576]{0}', space=vmem, size = 0x6000, scoped, tag = 'output window, operand 0']
    #allocation11 [shape = 'u8[24576]{0}', space=vmem, size = 0x6000, scoped, tag = 'output window, operand 1']
    #allocation12 [shape = 's32[2]{0}', space=sflag, size = 0x8, scoped, tag = 'scoped memory for tpu_custom_call.1']
    %13 = vsyncpa [#allocation3], 0
    %s14 = scalar_lea.sflag [#allocation3], 1
    %15 = vsyncpa %s14, 0
    %16 = vsyncpa [#allocation6], 0
    %17 = vsyncpa [#allocation9], 0
    %18 = vsyncpa [#allocation4], 0
    %s19 = scalar_lea.sflag [#allocation4], 1
    %20 = vsyncpa %s19, 0
    %21 = vsyncpa [#allocation12], 0
    %s22 = scalar_lea.sflag [#allocation12], 1
    %23 = vsyncpa %s22, 0
    loop: start=0, step=1, limit=4
    $region2: #{tpu_custom_call.1} parent=1 // loop_pre_header
      _
    $region3: #{tpu_custom_call.1} parent=1 // loop_header
      %s25 = sphi 0, %s29
      %p26 = scmp.ge.s32.totalorder %s25, 4
      %s35 = sphi 0, %s37
      %s38 = sphi 0, %s35
      %s39 = sphi 0, %s38
      %s55 = sphi 0, %s39
      %s59 = sphi 0, %s59
      %s61 = sphi 0, %s59
      %s62 = sphi 0, %s61
      %s76 = sphi 0, %s62
      %s80 = sphi 0, %s80
      %s82 = sphi 0, %s80
      %s83 = sphi 0, %s82
      %s97 = sphi 0, %s83
      %s101 = sphi 0, %s101
      %s103 = sphi 0, %s101
      %s104 = sphi 0, %s103
      %s118 = sphi 0, %s104
      %s122 = sphi 0, %s122
      %s124 = sphi 0, %s122
      %s125 = sphi 0, %s124
      %s139 = sphi 0, %s125
      %s143 = sphi 0, %s143
      %s145 = sphi 0, %s143
      %s146 = sphi 0, %s145
      %s160 = sphi 0, %s146
      %s166 = sphi 0, %s168
      %s169 = sphi 0, %s166
      %s170 = sphi 0, %s169
      %s186 = sphi 0, %s170
      %s192 = sphi 0, %s194
      %s195 = sphi 0, %s192
      %s196 = sphi 0, %s195
      %s212 = sphi 0, %s196
    $region4: #{tpu_custom_call.1} parent=1 // loop_header_branch
      %28 = sbr.rel (%p26) target = $region8
    $region5: #{tpu_custom_call.1} parent=1 // loop_body
      %s30 = ssub.s32 %s25, 1
      %s31 = ssub.s32 %s25, 2
      %s32 = sadd.s32 %s25, 1
      %s33 = ssub.s32 %s25, %s32
      %p34 = scmp.eq.s32.totalorder %s33, 0
      %s36 = sadd.s32 %s35, 1
      %s37 = scalar_select %p34, %s35, %s36
      %p40 = pneg %p34
      %p41 = scmp.eq.s32.totalorder %s25, 1
      %p42 = por %p40, %p41
      %p43 = scmp.ne.s32.totalorder %s35, %s38
      %p44 = scmp.eq.s32.totalorder %s25, 0
      %p45 = por %p43, %p44
      %p46 = scmp.ne.s32.totalorder %s35, %s38
      %p47 = scmp.eq.s32.totalorder %s30, 1
      %p48 = por %p46, %p47
      %p49 = scmp.ne.s32.totalorder %s38, %s39
      %p50 = scmp.eq.s32.totalorder %s30, 0
      %p51 = por %p49, %p50
      %p52 = scmp.ne.s32.totalorder %s38, %s39
      %p53 = scmp.eq.s32.totalorder %s31, 1
      %p54 = por %p52, %p53
      %p56 = scmp.ne.s32.totalorder %s39, %s55
      %p57 = scmp.eq.s32.totalorder %s31, 0
      %p58 = por %p56, %p57
      %s60 = sadd.s32 %s59, 1
      %p63 = scmp.eq.s32.totalorder %s25, 1
      %p64 = scmp.ne.s32.totalorder %s59, %s61
      %p65 = scmp.eq.s32.totalorder %s25, 0
      %p66 = por %p64, %p65
      %p67 = scmp.ne.s32.totalorder %s59, %s61
      %p68 = scmp.eq.s32.totalorder %s30, 1
      %p69 = por %p67, %p68
      %p70 = scmp.ne.s32.totalorder %s61, %s62
      %p71 = scmp.eq.s32.totalorder %s30, 0
      %p72 = por %p70, %p71
      %p73 = scmp.ne.s32.totalorder %s61, %s62
      %p74 = scmp.eq.s32.totalorder %s31, 1
      %p75 = por %p73, %p74
      %p77 = scmp.ne.s32.totalorder %s62, %s76
      %p78 = scmp.eq.s32.totalorder %s31, 0
      %p79 = por %p77, %p78
      %s81 = sadd.s32 %s80, 1
      %p84 = scmp.eq.s32.totalorder %s25, 1
      %p85 = scmp.ne.s32.totalorder %s80, %s82
      %p86 = scmp.eq.s32.totalorder %s25, 0
      %p87 = por %p85, %p86
      %p88 = scmp.ne.s32.totalorder %s80, %s82
      %p89 = scmp.eq.s32.totalorder %s30, 1
      %p90 = por %p88, %p89
      %p91 = scmp.ne.s32.totalorder %s82, %s83
      %p92 = scmp.eq.s32.totalorder %s30, 0
      %p93 = por %p91, %p92
      %p94 = scmp.ne.s32.totalorder %s82, %s83
      %p95 = scmp.eq.s32.totalorder %s31, 1
      %p96 = por %p94, %p95
      %p98 = scmp.ne.s32.totalorder %s83, %s97
      %p99 = scmp.eq.s32.totalorder %s31, 0
      %p100 = por %p98, %p99
      %s102 = sadd.s32 %s101, 1
      %p105 = scmp.eq.s32.totalorder %s25, 1
      %p106 = scmp.ne.s32.totalorder %s101, %s103
      %p107 = scmp.eq.s32.totalorder %s25, 0
      %p108 = por %p106, %p107
      %p109 = scmp.ne.s32.totalorder %s101, %s103
      %p110 = scmp.eq.s32.totalorder %s30, 1
      %p111 = por %p109, %p110
      %p112 = scmp.ne.s32.totalorder %s103, %s104
      %p113 = scmp.eq.s32.totalorder %s30, 0
      %p114 = por %p112, %p113
      %p115 = scmp.ne.s32.totalorder %s103, %s104
      %p116 = scmp.eq.s32.totalorder %s31, 1
      %p117 = por %p115, %p116
      %p119 = scmp.ne.s32.totalorder %s104, %s118
      %p120 = scmp.eq.s32.totalorder %s31, 0
      %p121 = por %p119, %p120
      %s123 = sadd.s32 %s122, 1
      %p126 = scmp.eq.s32.totalorder %s25, 1
      %p127 = scmp.ne.s32.totalorder %s122, %s124
      %p128 = scmp.eq.s32.totalorder %s25, 0
      %p129 = por %p127, %p128
      %p130 = scmp.ne.s32.totalorder %s122, %s124
      %p131 = scmp.eq.s32.totalorder %s30, 1
      %p132 = por %p130, %p131
      %p133 = scmp.ne.s32.totalorder %s124, %s125
      %p134 = scmp.eq.s32.totalorder %s30, 0
      %p135 = por %p133, %p134
      %p136 = scmp.ne.s32.totalorder %s124, %s125
      %p137 = scmp.eq.s32.totalorder %s31, 1
      %p138 = por %p136, %p137
      %p140 = scmp.ne.s32.totalorder %s125, %s139
      %p141 = scmp.eq.s32.totalorder %s31, 0
      %p142 = por %p140, %p141
      %s144 = sadd.s32 %s143, 1
      %p147 = scmp.eq.s32.totalorder %s25, 1
      %p148 = scmp.ne.s32.totalorder %s143, %s145
      %p149 = scmp.eq.s32.totalorder %s25, 0
      %p150 = por %p148, %p149
      %p151 = scmp.ne.s32.totalorder %s143, %s145
      %p152 = scmp.eq.s32.totalorder %s30, 1
      %p153 = por %p151, %p152
      %p154 = scmp.ne.s32.totalorder %s145, %s146
      %p155 = scmp.eq.s32.totalorder %s30, 0
      %p156 = por %p154, %p155
      %p157 = scmp.ne.s32.totalorder %s145, %s146
      %p158 = scmp.eq.s32.totalorder %s31, 1
      %p159 = por %p157, %p158
      %p161 = scmp.ne.s32.totalorder %s146, %s160
      %p162 = scmp.eq.s32.totalorder %s31, 0
      %p163 = por %p161, %p162
      %s164 = ssub.s32 %s25, %s32
      %p165 = scmp.eq.s32.totalorder %s164, 0
      %s167 = sadd.s32 %s166, 1
      %s168 = scalar_select %p165, %s166, %s167
      %p171 = pneg %p165
      %p172 = scmp.eq.s32.totalorder %s25, 1
      %p173 = por %p171, %p172
      %p174 = scmp.ne.s32.totalorder %s166, %s169
      %p175 = scmp.eq.s32.totalorder %s25, 0
      %p176 = por %p174, %p175
      %p177 = scmp.ne.s32.totalorder %s166, %s169
      %p178 = scmp.eq.s32.totalorder %s30, 1
      %p179 = por %p177, %p178
      %p180 = scmp.ne.s32.totalorder %s169, %s170
      %p181 = scmp.eq.s32.totalorder %s30, 0
      %p182 = por %p180, %p181
      %p183 = scmp.ne.s32.totalorder %s169, %s170
      %p184 = scmp.eq.s32.totalorder %s31, 1
      %p185 = por %p183, %p184
      %p187 = scmp.ne.s32.totalorder %s170, %s186
      %p188 = scmp.eq.s32.totalorder %s31, 0
      %p189 = por %p187, %p188
      %s190 = ssub.s32 %s25, %s32
      %p191 = scmp.eq.s32.totalorder %s190, 0
      %s193 = sadd.s32 %s192, 1
      %s194 = scalar_select %p191, %s192, %s193
      %p197 = pneg %p191
      %p198 = scmp.eq.s32.totalorder %s25, 1
      %p199 = por %p197, %p198
      %p200 = scmp.ne.s32.totalorder %s192, %s195
      %p201 = scmp.eq.s32.totalorder %s25, 0
      %p202 = por %p200, %p201
      %p203 = scmp.ne.s32.totalorder %s192, %s195
      %p204 = scmp.eq.s32.totalorder %s30, 1
      %p205 = por %p203, %p204
      %p206 = scmp.ne.s32.totalorder %s195, %s196
      %p207 = scmp.eq.s32.totalorder %s30, 0
      %p208 = por %p206, %p207
      %p209 = scmp.ne.s32.totalorder %s195, %s196
      %p210 = scmp.eq.s32.totalorder %s31, 1
      %p211 = por %p209, %p210
      %p213 = scmp.ne.s32.totalorder %s196, %s212
      %p214 = scmp.eq.s32.totalorder %s31, 0
      %p215 = por %p213, %p214
      %p216 = scmp.le.s32.totalorder 1, %s25
      %p217 = scmp.lt.s32.totalorder %s25, 3
      %p218 = pnand %p216, %p217
      %p219 = pneg %p218
      // Predicated region
      $region9: #{tpu_custom_call.1} parent=5 // pred_check
        _
      $region10: #{tpu_custom_call.1} parent=5 // pred_check_branch
        %221 = sbr.rel (%p218) target = $region12
      $region11: #{tpu_custom_call.1} parent=5 // pred_region
        %s222 = ssub.s32 %s25, 1
        // Predicated region
        $region13: #{tpu_custom_call.1} parent=11 // pred_check
          %p223 = pneg %p72
        $region14: #{tpu_custom_call.1} parent=11 // pred_check_branch
          %225 = sbr.rel (%p223) target = $region16
        $region15: #{tpu_custom_call.1} parent=11 // pred_region
          %s227 = ssub.s32 512, 512
          %228 = vsyncadd [#allocation6], %s227
          %s229 = sshll.u32 [#allocation5], 4
          %s230 = int_to_ptr.vmem [resolvable:$true] %s229
          %235 = dma.hbm_to_vmem [thread:$0]  %s1, 512, %s230, [#allocation6], 128, 128, 8
        $region16: #{tpu_custom_call.1} parent=11 // pred_fallthru
          _
        // Predicated region
        $region17: #{tpu_custom_call.1} parent=11 // pred_check
          %p236 = pneg %p93
        $region18: #{tpu_custom_call.1} parent=11 // pred_check_branch
          %238 = sbr.rel (%p236) target = $region20
        $region19: #{tpu_custom_call.1} parent=11 // pred_region
          %s240 = ssub.s32 512, 512
          %241 = vsyncadd [#allocation6], %s240
          %s242 = sshll.u32 [#allocation7], 4
          %s243 = int_to_ptr.vmem [resolvable:$true] %s242
          %248 = dma.hbm_to_vmem [thread:$0]  %s2, 512, %s243, [#allocation6], 128, 128, 8
        $region20: #{tpu_custom_call.1} parent=11 // pred_fallthru
          _
        // Predicated region
        $region21: #{tpu_custom_call.1} parent=11 // pred_check
          %p249 = pneg %p114
        $region22: #{tpu_custom_call.1} parent=11 // pred_check_branch
          %251 = sbr.rel (%p249) target = $region24
        $region23: #{tpu_custom_call.1} parent=11 // pred_region
          _
        $region24: #{tpu_custom_call.1} parent=11 // pred_fallthru
          _
        // Predicated region
        $region25: #{tpu_custom_call.1} parent=11 // pred_check
          %p252 = pneg %p135
        $region26: #{tpu_custom_call.1} parent=11 // pred_check_branch
          %254 = sbr.rel (%p252) target = $region28
        $region27: #{tpu_custom_call.1} parent=11 // pred_region
          %s256 = ssub.s32 512, 512
          %257 = vsyncadd [#allocation9], %s256
          %s258 = sshll.u32 [#allocation8], 4
          %s259 = int_to_ptr.vmem [resolvable:$true] %s258
          %264 = dma.hbm_to_vmem [thread:$0]  %s4, 512, %s259, [#allocation9], 128, 128, 8
        $region28: #{tpu_custom_call.1} parent=11 // pred_fallthru
          _
        // Predicated region
        $region29: #{tpu_custom_call.1} parent=11 // pred_check
          %p265 = pneg %p156
        $region30: #{tpu_custom_call.1} parent=11 // pred_check_branch
          %267 = sbr.rel (%p265) target = $region32
        $region31: #{tpu_custom_call.1} parent=11 // pred_region
          _
        $region32: #{tpu_custom_call.1} parent=11 // pred_fallthru
          _
      $region12: #{tpu_custom_call.1} parent=5 // pred_fallthru
        _
      %p268 = scmp.lt.s32.totalorder %s25, 2
      // Predicated region
      $region33: #{tpu_custom_call.1} parent=5 // pred_check
        %p269 = pneg %p268
      $region34: #{tpu_custom_call.1} parent=5 // pred_check_branch
        %271 = sbr.rel (%p269) target = $region36
      $region35: #{tpu_custom_call.1} parent=5 // pred_region
        // Predicated region
        $region37: #{tpu_custom_call.1} parent=35 // pred_check
          %p272 = pneg %p45
        $region38: #{tpu_custom_call.1} parent=35 // pred_check_branch
          %274 = sbr.rel (%p272) target = $region40
        $region39: #{tpu_custom_call.1} parent=35 // pred_region
          %s275 = sand.u32 %s35, 1
          %s276 = scalar_lea.sflag [#allocation3], %s275
          %s277 = sand.u32 %s35, 1
          %s278 = smul.addr %s277, 24
          %s279 = scalar_lea.vmem [#allocation2], %s278
          %s281 = ssub.s32 384, 384
          %282 = vsyncadd %s276, %s281
          %s283 = smul.addr %s25, 128
          %s284 = scalar_lea.hbm %s0, %s283
          %s285 = sshll.u32 %s279, 4
          %s286 = int_to_ptr.vmem [resolvable:$true] %s285
          %291 = dma.hbm_to_vmem [thread:$0]  %s284, 384, %s286, %s276, 256, 128, 8
        $region40: #{tpu_custom_call.1} parent=35 // pred_fallthru
          _
      $region36: #{tpu_custom_call.1} parent=5 // pred_fallthru
        _
      %p292 = scmp.le.s32.totalorder 1, %s25
      %p293 = scmp.lt.s32.totalorder %s25, 3
      %p294 = pnand %p292, %p293
      %p295 = pneg %p294
      // Predicated region
      $region41: #{tpu_custom_call.1} parent=5 // pred_check
        _
      $region42: #{tpu_custom_call.1} parent=5 // pred_check_branch
        %297 = sbr.rel (%p294) target = $region44
      $region43: #{tpu_custom_call.1} parent=5 // pred_region
        %s298 = ssub.s32 %s25, 1
        %s299 = sand.u32 %s38, 1
        %s300 = scalar_lea.sflag [#allocation3], %s299
        %s301 = sand.u32 %s38, 1
        %s302 = smul.addr %s301, 24
        %s303 = scalar_lea.vmem [#allocation2], %s302
        // Predicated region
        $region45: #{tpu_custom_call.1} parent=43 // pred_check
          %p304 = pneg %p51
        $region46: #{tpu_custom_call.1} parent=43 // pred_check_branch
          %306 = sbr.rel (%p304) target = $region48
        $region47: #{tpu_custom_call.1} parent=43 // pred_region
          %307 = dma.done %s300, 384
        $region48: #{tpu_custom_call.1} parent=43 // pred_fallthru
          _
        // Predicated region
        $region49: #{tpu_custom_call.1} parent=43 // pred_check
          %p308 = pneg %p72
        $region50: #{tpu_custom_call.1} parent=43 // pred_check_branch
          %310 = sbr.rel (%p308) target = $region52
        $region51: #{tpu_custom_call.1} parent=43 // pred_region
          %311 = dma.done [#allocation6], 512
        $region52: #{tpu_custom_call.1} parent=43 // pred_fallthru
          _
        // Predicated region
        $region53: #{tpu_custom_call.1} parent=43 // pred_check
          %p312 = pneg %p93
        $region54: #{tpu_custom_call.1} parent=43 // pred_check_branch
          %314 = sbr.rel (%p312) target = $region56
        $region55: #{tpu_custom_call.1} parent=43 // pred_region
          %315 = dma.done [#allocation6], 512
        $region56: #{tpu_custom_call.1} parent=43 // pred_fallthru
          _
        // Predicated region
        $region57: #{tpu_custom_call.1} parent=43 // pred_check
          %p316 = pneg %p135
        $region58: #{tpu_custom_call.1} parent=43 // pred_check_branch
          %318 = sbr.rel (%p316) target = $region60
        $region59: #{tpu_custom_call.1} parent=43 // pred_region
          %319 = dma.done [#allocation9], 512
        $region60: #{tpu_custom_call.1} parent=43 // pred_fallthru
          _
        %s320 = sand.u32 %s38, 1
        %s321 = scalar_lea.sflag [#allocation3], %s320
        %s322 = sand.u32 %s38, 1
        %s323 = smul.addr %s322, 24
        %s324 = scalar_lea.vmem [#allocation2], %s323
        %p325 = pneg %p51
        %p326 = pneg %p48
        %p327 = pneg %p72
        %p328 = pneg %p69
        %p329 = pneg %p93
        %p330 = pneg %p90
        %p331 = pneg %p114
        %p332 = pneg %p111
        %p333 = pneg %p135
        %p334 = pneg %p132
        %p335 = pneg %p156
        %p336 = pneg %p153
        %p337 = pneg %p182
        %p338 = pneg %p179
        %s339 = sand.u32 %s169, 1
        %s340 = scalar_lea.sflag [#allocation4], %s339
        %s341 = sand.u32 %s169, 1
        %s342 = smul.addr %s341, 24
        %s343 = scalar_lea.vmem [#allocation10], %s342
        %p344 = pneg %p208
        %p345 = pneg %p205
        %s346 = sand.u32 %s195, 1
        %s347 = scalar_lea.sflag [#allocation12], %s346
        %s348 = sand.u32 %s195, 1
        %s349 = smul.addr %s348, 24
        %s350 = scalar_lea.vmem [#allocation11], %s349
        %v351 = vld [vmem:[%s303] sm:$0xff]
        %v352 = vld [vmem:[%s303 + $0x8] sm:$0xff]
        %v353 = vld [vmem:[%s303 + $0x10] sm:$0xff]
        %v354 = vld [vmem:[#allocation5] sm:$0xff]
        %v355 = vld [vmem:[#allocation5 + $0x8] sm:$0xff]
        %v356 = vld [vmem:[#allocation5 + $0x10] sm:$0xff]
        %v357 = vld [vmem:[#allocation5 + $0x18] sm:$0xff]
        %v358 = vld [vmem:[#allocation7] sm:$0xff]
        %v359 = vld [vmem:[#allocation7 + $0x8] sm:$0xff]
        %v360 = vld [vmem:[#allocation7 + $0x10] sm:$0xff]
        %v361 = vld [vmem:[#allocation7 + $0x18] sm:$0xff]
        %vm362 = vcmask 261120
        %v364 = vsel %vm362, %v351, 0
        %v367 = vsel %vm362, %v352, 0
        %v370 = vsel %vm362, %v353, 0
        %372 = vmatprep.subr.mxu0 0.0
        %373 = vmatpush1.msra.mxu0 %v358
        %374 = vmatprep.subr.mxu0 0.0
        %375 = vmatpush1.msra.mxu0 %v359
        %376 = vmatprep.subr.mxu0 0.0
        %377 = vmatpush1.msra.mxu0 %v360
        %378 = vmatprep.subr.mxu0 0.0
        %379 = vmatpush1.msra.mxu0 %v361
        %380 = vmatprep.subr.mxu0 0.0
        %381 = vmatpush1.msra.mxu0 0.0
        %382 = vmatprep.subr.mxu0 0.0
        %383 = vmatpush1.msra.mxu0 0.0
        %384 = vmatprep.subr.mxu0 0.0
        %385 = vmatpush1.msra.mxu0 0.0
        %386 = vmatprep.subr.mxu0 0.0
        %387 = vmatpush1.msra.mxu0 0.0
        %388 = vmatprep.subr.mxu0 0.0
        %389 = vmatpush1.msra.mxu0 0.0
        %390 = vmatprep.subr.mxu0 0.0
        %391 = vmatpush1.msra.mxu0 0.0
        %392 = vmatprep.subr.mxu0 0.0
        %393 = vmatpush1.msra.mxu0 0.0
        %394 = vmatprep.subr.mxu0 0.0
        %395 = vmatpush1.msra.mxu0 0.0
        %396 = vmatprep.subr.mxu0 0.0
        %397 = vmatpush1.msra.mxu0 0.0
        %398 = vmatprep.subr.mxu0 0.0
        %399 = vmatpush1.msra.mxu0 0.0
        %400 = vmatprep.subr.mxu0 0.0
        %401 = vmatpush1.msra.mxu0 0.0
        %402 = vmatprep.subr.mxu0 0.0
        %403 = vmatpush1.msra.mxu0 0.0
        %404 = vmatprep.subr.mxu0 0.0
        %405 = vmatpush1.msra.mxu0 0.0
        %406 = vmatprep.subr.mxu0 0.0
        %407 = vmatpush1.msra.mxu0 0.0
        %408 = vmatprep.subr.mxu0 0.0
        %409 = vmatpush1.msra.mxu0 0.0
        %410 = vmatprep.subr.mxu0 0.0
        %411 = vmatpush1.msra.mxu0 0.0
        %412 = vmatprep.subr.mxu0 0.0
        %413 = vmatpush1.msra.mxu0 0.0
        %414 = vmatprep.subr.mxu0 0.0
        %415 = vmatpush1.msra.mxu0 0.0
        %416 = vmatprep.subr.mxu0 0.0
        %417 = vmatpush1.msra.mxu0 0.0
        %418 = vmatprep.subr.mxu0 0.0
        %419 = vmatpush1.msra.mxu0 0.0
        %420 = vmatprep.subr.mxu0 0.0
        %421 = vmatpush1.msra.mxu0 0.0
        %422 = vmatprep.subr.mxu0 0.0
        %423 = vmatpush1.msra.mxu0 0.0
        %424 = vmatprep.subr.mxu0 0.0
        %425 = vmatpush1.msra.mxu0 0.0
        %426 = vmatprep.subr.mxu0 0.0
        %427 = vmatpush1.msra.mxu0 0.0
        %428 = vmatprep.subr.mxu0 0.0
        %429 = vmatpush1.msra.mxu0 0.0
        %430 = vmatprep.subr.mxu0 0.0
        %431 = vmatpush1.msra.mxu0 0.0
        %432 = vmatprep.subr.mxu0 0.0
        %433 = vmatpush1.msra.mxu0 0.0
        %434 = vmatprep.subr.mxu0 0.0
        %435 = vmatpush1.msra.mxu0 0.0
        %436 = vmatprep.mubr.f32.mxu0 0.0
        %437 = vmatmul.mubr.f32.gmra.mrb[0].mxu0 %v364
        %v438 = vpop.f32.mrb[0].mxu0
        %v439 = vadd.f32 0.0, %v438
        %v440 = vpop.f32.mrb[0].mxu0
        %441 = vmatprep.mubr.f32.mxu0 0.0
        %442 = vmatmul.mubr.f32.gmra.mrb[0].mxu0 %v367
        %v443 = vpop.f32.mrb[0].mxu0
        %v444 = vadd.f32 0.0, %v443
        %v445 = vpop.f32.mrb[0].mxu0
        %446 = vmatprep.mubr.f32.mxu0 0.0
        %447 = vmatmul.mubr.f32.gmra.mrb[0].mxu0 %v370
        %v448 = vpop.f32.mrb[0].mxu0
        %v449 = vadd.f32 0.0, %v448
        %v450 = vpop.f32.mrb[0].mxu0
        %451 = vdwg.mxu0
        %v452 = vld [vmem:[%s3] sm:$0x1]
        %v454 = vlaneseq
        %v455 = vshrl.u32 %v454, 7
        %v456 = vsub.s32 0, %v455
        %v457 = vrot.slane %v452, %v456
        %459 = vmatprep.subr.mxu0 0.0
        %460 = vmatpush1.msra.mxu0 %v354
        %461 = vmatprep.subr.mxu0 0.0
        %462 = vmatpush1.msra.mxu0 %v355
        %463 = vmatprep.subr.mxu0 0.0
        %464 = vmatpush1.msra.mxu0 %v356
        %465 = vmatprep.subr.mxu0 0.0
        %466 = vmatpush1.msra.mxu0 %v357
        %467 = vmatprep.subr.mxu0 0.0
        %468 = vmatpush1.msra.mxu0 0.0
        %469 = vmatprep.subr.mxu0 0.0
        %470 = vmatpush1.msra.mxu0 0.0
        %471 = vmatprep.subr.mxu0 0.0
        %472 = vmatpush1.msra.mxu0 0.0
        %473 = vmatprep.subr.mxu0 0.0
        %474 = vmatpush1.msra.mxu0 0.0
        %475 = vmatprep.subr.mxu0 0.0
        %476 = vmatpush1.msra.mxu0 0.0
        %477 = vmatprep.subr.mxu0 0.0
        %478 = vmatpush1.msra.mxu0 0.0
        %479 = vmatprep.subr.mxu0 0.0
        %480 = vmatpush1.msra.mxu0 0.0
        %481 = vmatprep.subr.mxu0 0.0
        %482 = vmatpush1.msra.mxu0 0.0
        %483 = vmatprep.subr.mxu0 0.0
        %484 = vmatpush1.msra.mxu0 0.0
        %485 = vmatprep.subr.mxu0 0.0
        %486 = vmatpush1.msra.mxu0 0.0
        %487 = vmatprep.subr.mxu0 0.0
        %488 = vmatpush1.msra.mxu0 0.0
        %489 = vmatprep.subr.mxu0 0.0
        %490 = vmatpush1.msra.mxu0 0.0
        %491 = vmatprep.subr.mxu0 0.0
        %492 = vmatpush1.msra.mxu0 0.0
        %493 = vmatprep.subr.mxu0 0.0
        %494 = vmatpush1.msra.mxu0 0.0
        %495 = vmatprep.subr.mxu0 0.0
        %496 = vmatpush1.msra.mxu0 0.0
        %497 = vmatprep.subr.mxu0 0.0
        %498 = vmatpush1.msra.mxu0 0.0
        %499 = vmatprep.subr.mxu0 0.0
        %500 = vmatpush1.msra.mxu0 0.0
        %501 = vmatprep.subr.mxu0 0.0
        %502 = vmatpush1.msra.mxu0 0.0
        %503 = vmatprep.subr.mxu0 0.0
        %504 = vmatpush1.msra.mxu0 0.0
        %505 = vmatprep.subr.mxu0 0.0
        %506 = vmatpush1.msra.mxu0 0.0
        %507 = vmatprep.subr.mxu0 0.0
        %508 = vmatpush1.msra.mxu0 0.0
        %509 = vmatprep.subr.mxu0 0.0
        %510 = vmatpush1.msra.mxu0 0.0
        %511 = vmatprep.subr.mxu0 0.0
        %512 = vmatpush1.msra.mxu0 0.0
        %513 = vmatprep.subr.mxu0 0.0
        %514 = vmatpush1.msra.mxu0 0.0
        %515 = vmatprep.subr.mxu0 0.0
        %516 = vmatpush1.msra.mxu0 0.0
        %517 = vmatprep.subr.mxu0 0.0
        %518 = vmatpush1.msra.mxu0 0.0
        %519 = vmatprep.subr.mxu0 0.0
        %520 = vmatpush1.msra.mxu0 0.0
        %521 = vmatprep.subr.mxu0 0.0
        %522 = vmatpush1.msra.mxu0 0.0
        %523 = vmatprep.mubr.f32.mxu0 0.0
        %524 = vmatmul.mubr.f32.gmra.mrb[0].mxu0 %v364
        %v525 = vpop.f32.mrb[0].mxu0
        %v526 = vadd.f32 %v457, %v525
        %v527 = vpop.f32.mrb[0].mxu0
        %528 = vmatprep.mubr.f32.mxu0 0.0
        %529 = vmatmul.mubr.f32.gmra.mrb[0].mxu0 %v367
        %v530 = vpop.f32.mrb[0].mxu0
        %v531 = vadd.f32 %v457, %v530
        %v532 = vpop.f32.mrb[0].mxu0
        %533 = vmatprep.mubr.f32.mxu0 0.0
        %534 = vmatmul.mubr.f32.gmra.mrb[0].mxu0 %v370
        %v535 = vpop.f32.mrb[0].mxu0
        %v536 = vadd.f32 %v457, %v535
        %v537 = vpop.f32.mrb[0].mxu0
        %538 = vdwg.mxu0
        %v539 = vadd.f32 %v526, %v444
        %v540 = vmax.f32 %v539, 0.0
        %v541 = vadd.f32 %v531, %v439
        %v542 = vmax.f32 %v541, 0.0
        %v543 = vadd.f32 %v540, %v542
        %v544 = vadd.f32 %v526, %v449
        %v545 = vmax.f32 %v544, 0.0
        %v546 = vadd.f32 %v536, %v439
        %v547 = vmax.f32 %v546, 0.0
        %v548 = vadd.f32 %v545, %v547
        %v549 = vadd.f32 %v543, %v548
        %v550 = vadd.f32 %v531, %v449
        %v551 = vmax.f32 %v550, 0.0
        %v552 = vadd.f32 %v536, %v444
        %v553 = vmax.f32 %v552, 0.0
        %v554 = vadd.f32 %v551, %v553
        %v555 = vadd.f32 %v543, %v554
        %v556 = vadd.f32 %v548, %v554
        %v557 = vld [vmem:[#allocation8] sm:$0xff]
        %v558 = vld [vmem:[#allocation8 + $0x8] sm:$0xff]
        %v559 = vld [vmem:[#allocation8 + $0x10] sm:$0xff]
        %v560 = vld [vmem:[#allocation8 + $0x18] sm:$0xff]
        %v561 = vld [vmem:[%s5] sm:$0x1]
        %v563 = vlaneseq
        %v564 = vshrl.u32 %v563, 7
        %v565 = vsub.s32 0, %v564
        %v566 = vrot.slane %v561, %v565
        %v569 = vsel %vm362, %v549, 0
        %v572 = vsel %vm362, %v555, 0
        %v575 = vsel %vm362, %v556, 0
        %577 = vmatprep.subr.mxu0 0.0
        %578 = vmatpush1.msra.mxu0 %v557
        %579 = vmatprep.subr.mxu0 0.0
        %580 = vmatpush1.msra.mxu0 %v558
        %581 = vmatprep.subr.mxu0 0.0
        %582 = vmatpush1.msra.mxu0 %v559
        %583 = vmatprep.subr.mxu0 0.0
        %584 = vmatpush1.msra.mxu0 %v560
        %585 = vmatprep.subr.mxu0 0.0
        %586 = vmatpush1.msra.mxu0 0.0
        %587 = vmatprep.subr.mxu0 0.0
        %588 = vmatpush1.msra.mxu0 0.0
        %589 = vmatprep.subr.mxu0 0.0
        %590 = vmatpush1.msra.mxu0 0.0
        %591 = vmatprep.subr.mxu0 0.0
        %592 = vmatpush1.msra.mxu0 0.0
        %593 = vmatprep.subr.mxu0 0.0
        %594 = vmatpush1.msra.mxu0 0.0
        %595 = vmatprep.subr.mxu0 0.0
        %596 = vmatpush1.msra.mxu0 0.0
        %597 = vmatprep.subr.mxu0 0.0
        %598 = vmatpush1.msra.mxu0 0.0
        %599 = vmatprep.subr.mxu0 0.0
        %600 = vmatpush1.msra.mxu0 0.0
        %601 = vmatprep.subr.mxu0 0.0
        %602 = vmatpush1.msra.mxu0 0.0
        %603 = vmatprep.subr.mxu0 0.0
        %604 = vmatpush1.msra.mxu0 0.0
        %605 = vmatprep.subr.mxu0 0.0
        %606 = vmatpush1.msra.mxu0 0.0
        %607 = vmatprep.subr.mxu0 0.0
        %608 = vmatpush1.msra.mxu0 0.0
        %609 = vmatprep.subr.mxu0 0.0
        %610 = vmatpush1.msra.mxu0 0.0
        %611 = vmatprep.subr.mxu0 0.0
        %612 = vmatpush1.msra.mxu0 0.0
        %613 = vmatprep.subr.mxu0 0.0
        %614 = vmatpush1.msra.mxu0 0.0
        %615 = vmatprep.subr.mxu0 0.0
        %616 = vmatpush1.msra.mxu0 0.0
        %617 = vmatprep.subr.mxu0 0.0
        %618 = vmatpush1.msra.mxu0 0.0
        %619 = vmatprep.subr.mxu0 0.0
        %620 = vmatpush1.msra.mxu0 0.0
        %621 = vmatprep.subr.mxu0 0.0
        %622 = vmatpush1.msra.mxu0 0.0
        %623 = vmatprep.subr.mxu0 0.0
        %624 = vmatpush1.msra.mxu0 0.0
        %625 = vmatprep.subr.mxu0 0.0
        %626 = vmatpush1.msra.mxu0 0.0
        %627 = vmatprep.subr.mxu0 0.0
        %628 = vmatpush1.msra.mxu0 0.0
        %629 = vmatprep.subr.mxu0 0.0
        %630 = vmatpush1.msra.mxu0 0.0
        %631 = vmatprep.subr.mxu0 0.0
        %632 = vmatpush1.msra.mxu0 0.0
        %633 = vmatprep.subr.mxu0 0.0
        %634 = vmatpush1.msra.mxu0 0.0
        %635 = vmatprep.subr.mxu0 0.0
        %636 = vmatpush1.msra.mxu0 0.0
        %637 = vmatprep.subr.mxu0 0.0
        %638 = vmatpush1.msra.mxu0 0.0
        %639 = vmatprep.subr.mxu0 0.0
        %640 = vmatpush1.msra.mxu0 0.0
        %641 = vmatprep.mubr.f32.mxu0 0.0
        %642 = vmatmul.mubr.f32.gmra.mrb[0].mxu0 %v569
        %v643 = vpop.f32.mrb[0].mxu0
        %v644 = vadd.f32 %v566, %v643
        %v645 = vpop.f32.mrb[0].mxu0
        %646 = vmatprep.mubr.f32.mxu0 0.0
        %647 = vmatmul.mubr.f32.gmra.mrb[0].mxu0 %v572
        %v648 = vpop.f32.mrb[0].mxu0
        %v649 = vadd.f32 %v566, %v648
        %v650 = vpop.f32.mrb[0].mxu0
        %651 = vmatprep.mubr.f32.mxu0 0.0
        %652 = vmatmul.mubr.f32.gmra.mrb[0].mxu0 %v575
        %v653 = vpop.f32.mrb[0].mxu0
        %v654 = vadd.f32 %v566, %v653
        %v655 = vpop.f32.mrb[0].mxu0
        %656 = vdwg.mxu0
        %v657 = vxor.u32 %v644, 2147483648
        %v658 = vxor.u32 %v649, 2147483648
        %v659 = vxor.u32 %v654, 2147483648
        %v660 = vmul.f32 %v657, 1.442695
        %v661 = vpow.pop %v660
        %v662 = vmul.f32 %v658, 1.442695
        %v663 = vpow.pop %v662
        %v664 = vmul.f32 %v659, 1.442695
        %v665 = vpow.pop %v664
        %v666 = vadd.f32 %v661, 1.0
        %v667 = vadd.f32 %v663, 1.0
        %v668 = vadd.f32 %v665, 1.0
        %v669 = vrcp.pop %v666
        %v670 = vmul.f32 1.0, %v669
        %v671 = vrcp.pop %v667
        %v672 = vmul.f32 1.0, %v671
        %v673 = vrcp.pop %v668
        %v674 = vmul.f32 1.0, %v673
        %v675 = vmul.f32 %v351, %v670
        %v676 = vmul.f32 %v352, %v672
        %v677 = vmul.f32 %v353, %v674
        %678 = vst.msk [vmem:[%s343] sm:$0xff] %vm362, %v670
        %679 = vst.msk [vmem:[%s343 + $0x8] sm:$0xff] %vm362, %v672
        %680 = vst.msk [vmem:[%s343 + $0x10] sm:$0xff] %vm362, %v674
        %681 = vst.msk [vmem:[%s350] sm:$0xff] %vm362, %v675
        %682 = vst.msk [vmem:[%s350 + $0x8] sm:$0xff] %vm362, %v676
        %683 = vst.msk [vmem:[%s350 + $0x10] sm:$0xff] %vm362, %v677
        %s684 = sand.u32 %s169, 1
        %s685 = scalar_lea.sflag [#allocation4], %s684
        %s686 = sand.u32 %s169, 1
        %s687 = smul.addr %s686, 24
        %s688 = scalar_lea.vmem [#allocation10], %s687
        %s689 = sand.u32 %s195, 1
        %s690 = scalar_lea.sflag [#allocation12], %s689
        %s691 = sand.u32 %s195, 1
        %s692 = smul.addr %s691, 24
        %s693 = scalar_lea.vmem [#allocation11], %s692
        // Predicated region
        $region61: #{tpu_custom_call.1} parent=43 // pred_check
          %p694 = pneg %p179
        $region62: #{tpu_custom_call.1} parent=43 // pred_check_branch
          %696 = sbr.rel (%p694) target = $region64
        $region63: #{tpu_custom_call.1} parent=43 // pred_region
          %s698 = ssub.s32 384, 384
          %699 = vsyncadd %s685, %s698
          %s700 = smul.addr %s30, 128
          %s701 = scalar_lea.hbm %s6, %s700
          %s702 = sshll.u32 %s688, 4
          %s703 = int_to_ptr.vmem [resolvable:$true] %s702
          %708 = dma.vmem_to_hbm [thread:$0]  %s703, 384, %s701, %s685, 128, 256, 8
        $region64: #{tpu_custom_call.1} parent=43 // pred_fallthru
          _
        // Predicated region
        $region65: #{tpu_custom_call.1} parent=43 // pred_check
          %p709 = pneg %p205
        $region66: #{tpu_custom_call.1} parent=43 // pred_check_branch
          %711 = sbr.rel (%p709) target = $region68
        $region67: #{tpu_custom_call.1} parent=43 // pred_region
          %s713 = ssub.s32 384, 384
          %714 = vsyncadd %s690, %s713
          %s715 = smul.addr %s30, 128
          %s716 = scalar_lea.hbm %s7, %s715
          %s717 = sshll.u32 %s693, 4
          %s718 = int_to_ptr.vmem [resolvable:$true] %s717
          %723 = dma.vmem_to_hbm [thread:$0]  %s718, 384, %s716, %s690, 128, 256, 8
        $region68: #{tpu_custom_call.1} parent=43 // pred_fallthru
          _
      $region44: #{tpu_custom_call.1} parent=5 // pred_fallthru
        _
      %p724 = scmp.le.s32.totalorder 2, %s25
      // Predicated region
      $region69: #{tpu_custom_call.1} parent=5 // pred_check
        %p725 = pneg %p724
      $region70: #{tpu_custom_call.1} parent=5 // pred_check_branch
        %727 = sbr.rel (%p725) target = $region72
      $region71: #{tpu_custom_call.1} parent=5 // pred_region
        %s728 = ssub.s32 %s25, 2
        // Predicated region
        $region73: #{tpu_custom_call.1} parent=71 // pred_check
          %p729 = pneg %p185
        $region74: #{tpu_custom_call.1} parent=71 // pred_check_branch
          %731 = sbr.rel (%p729) target = $region76
        $region75: #{tpu_custom_call.1} parent=71 // pred_region
          %s732 = sand.u32 %s170, 1
          %s733 = scalar_lea.sflag [#allocation4], %s732
          %s734 = sand.u32 %s170, 1
          %s735 = smul.addr %s734, 24
          %s736 = scalar_lea.vmem [#allocation10], %s735
          %737 = dma.done %s733, 384
        $region76: #{tpu_custom_call.1} parent=71 // pred_fallthru
          _
        // Predicated region
        $region77: #{tpu_custom_call.1} parent=71 // pred_check
          %p738 = pneg %p211
        $region78: #{tpu_custom_call.1} parent=71 // pred_check_branch
          %740 = sbr.rel (%p738) target = $region80
        $region79: #{tpu_custom_call.1} parent=71 // pred_region
          %s741 = sand.u32 %s196, 1
          %s742 = scalar_lea.sflag [#allocation12], %s741
          %s743 = sand.u32 %s196, 1
          %s744 = smul.addr %s743, 24
          %s745 = scalar_lea.vmem [#allocation11], %s744
          %746 = dma.done %s742, 384
        $region80: #{tpu_custom_call.1} parent=71 // pred_fallthru
          _
      $region72: #{tpu_custom_call.1} parent=5 // pred_fallthru
        _
    $region6: #{tpu_custom_call.1} parent=1 // loop_footer
      %s29 = sadd.s32 1, %s25
    $region7: #{tpu_custom_call.1} parent=1 // loop_footer_branch
      %24 = sbr.rel target = $region3
    $region8: #{tpu_custom_call.1} parent=1 // loop_exit
      _
    %747 = vsyncpa [#allocation3], 1
    %s748 = scalar_lea.sflag [#allocation3], 1
    %749 = vsyncpa %s748, 1
    %750 = vsyncpa [#allocation6], 1
    %751 = vsyncpa [#allocation9], 1
    %752 = vsyncpa [#allocation4], 1
    %s753 = scalar_lea.sflag [#allocation4], 1
    %754 = vsyncpa %s753, 1
    %755 = vsyncpa [#allocation12], 1
    %s756 = scalar_lea.sflag [#allocation12], 1
    %757 = vsyncpa %s756, 1

</llo_original>
